<compile_context>
chip_gen: v5e
topology: v5e:2x2
jax: 0.10.0
libtpu: 0.0.40
codegen_flags: <defaults>
</compile_context>

<pallas_src>
import functools

import jax
import jax.numpy as jnp
import numpy as np
from jax.experimental import pallas as pl
from jax.experimental.pallas import tpu as pltpu


def _pixel_shuffle_kernel(x_ref, l_ref, r_ref, o_ref, *, r, cblk):
    # x_ref: (1, cblk*r*r, H, W)   input channels feeding the cblk output channels
    # l_ref: (r, H*r, H)           row scatter:    L_i[h*r + i, h] = 1
    # r_ref: (r, W, W*r)           column scatter: R_j[w, w*r + j] = 1
    # o_ref: (1, cblk, H*r, W*r)
    for c in range(cblk):                      # static, small
        base = c * r * r
        acc = None
        for i in range(r):                     # static, r is tiny
            # Lane interleave: Y_i[h, w*r + j] = x[base + i*r + j, h, w]
            y = jnp.dot(x_ref[0, base + i * r, :, :], r_ref[0],
                        preferred_element_type=jnp.float32)
            for j in range(1, r):
                y = y + jnp.dot(x_ref[0, base + i * r + j, :, :], r_ref[j],
                                preferred_element_type=jnp.float32)
            # Row interleave: out[h*r + i, :] = Y_i[h, :] via one-hot L_i.
            z = jnp.dot(l_ref[i], y.astype(l_ref.dtype),
                        preferred_element_type=jnp.float32)
            acc = z if acc is None else acc + z
        o_ref[0, c, :, :] = acc.astype(o_ref.dtype)


def _pick_channel_block(C, r, H, W, itemsize):
    # Pick the largest channel block (divisor of C) whose input+output block
    # bytes stay within a conservative per-step budget, so double buffering
    # fits comfortably even on v7x VMEM.  Cap the block so the static unroll
    # of (cblk * (r*r + r)) matmuls stays modest.
    budget_bytes = 4 * 1024 * 1024   # per-step input + output block bytes
    max_cblk = 8
    best = 1
    for d in range(1, C + 1):
        if C % d:
            continue
        if d > max_cblk:
            break
        block_bytes = 2 * d * r * r * H * W * itemsize
        if block_bytes <= budget_bytes:
            best = d
    return best


def pixel_shuffle(x, upscale_factor):
    r = int(upscale_factor)
    B, C_in, H, W = x.shape
    assert C_in % (r * r) == 0, "channels must be divisible by upscale_factor**2"
    C = C_in // (r * r)
    Ho, Wo = H * r, W * r

    # One-hot permutation matrices (exact), built once host-side.
    R = np.zeros((r, W, Wo), dtype=np.float32)
    for j in range(r):
        R[j, np.arange(W), np.arange(W) * r + j] = 1.0     # R_j[w, w*r + j] = 1
    L = np.zeros((r, Ho, H), dtype=np.float32)
    for i in range(r):
        L[i, np.arange(H) * r + i, np.arange(H)] = 1.0      # L_i[h*r + i, h] = 1
    R = jnp.asarray(R, dtype=x.dtype)
    L = jnp.asarray(L, dtype=x.dtype)

    cblk = _pick_channel_block(C, r, H, W, jnp.dtype(x.dtype).itemsize)

    kernel = functools.partial(_pixel_shuffle_kernel, r=r, cblk=cblk)

    return pl.pallas_call(
        kernel,
        out_shape=jax.ShapeDtypeStruct((B, C, Ho, Wo), x.dtype),
        grid=(B, C // cblk),
        in_specs=[
            pl.BlockSpec((1, cblk * r * r, H, W), lambda b, c: (b, c, 0, 0)),
            # Constant index_maps -> permutation matrices stay VMEM resident.
            pl.BlockSpec((r, Ho, H), lambda b, c: (0, 0, 0)),
            pl.BlockSpec((r, W, Wo), lambda b, c: (0, 0, 0)),
        ],
        out_specs=pl.BlockSpec((1, cblk, Ho, Wo), lambda b, c: (b, c, 0, 0)),
        compiler_params=pltpu.CompilerParams(
            dimension_semantics=("parallel", "parallel"),
            vmem_limit_bytes=32 * 1024 * 1024,
        ),
    )(x, L, R)


def _reference_pixel_shuffle(x, r):
    B, C_in, H, W = x.shape
    C = C_in // (r * r)
    y = x.reshape(B, C, r, r, H, W)
    y = jnp.transpose(y, (0, 1, 4, 2, 5, 3))
    return y.reshape(B, C, H * r, W * r)


if __name__ == "__main__":
    upscale_factor = 2
    B, C_in, H, W = 2, 8, 16, 16   # -> output (2, 2, 32, 32)

    key = jax.random.PRNGKey(0)
    x = jax.random.normal(key, (B, C_in, H, W), dtype=jnp.float32)

    out = pixel_shuffle(x, upscale_factor)
    out = jax.block_until_ready(out)

    ref = _reference_pixel_shuffle(x, upscale_factor)
    assert out.shape == ref.shape and out.dtype == ref.dtype
    assert np.allclose(np.asarray(out), np.asarray(ref), rtol=1e-6, atol=1e-6)

    print("KERNEL_OK")
</pallas_src>

<mosaic_0001>
module attributes {stable_mosaic.version = 11 : i64} {
  func.func @_pixel_shuffle_kernel(%arg0: i32, %arg1: i32, %arg2: memref<1x8x16x16xf32, #tpu.memory_space<vmem>>, %arg3: memref<2x32x16xf32, #tpu.memory_space<vmem>>, %arg4: memref<2x16x32xf32, #tpu.memory_space<vmem>>, %arg5: memref<1x2x32x32xf32, #tpu.memory_space<vmem>>) attributes {dimension_semantics = [#tpu.dimension_semantics<parallel>, #tpu.dimension_semantics<parallel>], iteration_bounds = array<i64: 2, 1>, scalar_prefetch = 0 : i64, scratch_operands = 0 : i64, tpu.core_type = #tpu.core_type<tc>, window_params = [{transform_indices = @transform_0, window_bounds = array<i64: 1, 8, 16, 16>}, {pipeline_mode = #tpu.pipeline_mode<synchronous>, transform_indices = @transform_1, window_bounds = array<i64: 2, 32, 16>}, {pipeline_mode = #tpu.pipeline_mode<synchronous>, transform_indices = @transform_2, window_bounds = array<i64: 2, 16, 32>}, {transform_indices = @transform_3, window_bounds = array<i64: 1, 2, 32, 32>}]} {
    %c0 = arith.constant 0 : index
    %c0_0 = arith.constant 0 : index
    %c0_1 = arith.constant 0 : index
    %c0_2 = arith.constant 0 : index
    %0 = vector.load %arg2[%c0, %c0_0, %c0_1, %c0_2] : memref<1x8x16x16xf32, #tpu.memory_space<vmem>>, vector<1x1x16x16xf32>
    %1 = vector.shape_cast %0 : vector<1x1x16x16xf32> to vector<16x16xf32>
    %c0_3 = arith.constant 0 : index
    %c0_4 = arith.constant 0 : index
    %c0_5 = arith.constant 0 : index
    %2 = vector.load %arg4[%c0_3, %c0_4, %c0_5] : memref<2x16x32xf32, #tpu.memory_space<vmem>>, vector<1x16x32xf32>
    %3 = vector.shape_cast %2 : vector<1x16x32xf32> to vector<16x32xf32>
    %cst = arith.constant dense<0.000000e+00> : vector<16x32xf32>
    %4 = tpu.matmul %1, %3, %cst {dimension_numbers = #tpu.dot_dimension_numbers<[1], [0], [0], [1], [0, 0, 1, 1], [], []>} : vector<16x16xf32>, vector<16x32xf32>, vector<16x32xf32> -> vector<16x32xf32>
    %c0_6 = arith.constant 0 : index
    %c1 = arith.constant 1 : index
    %c0_7 = arith.constant 0 : index
    %c0_8 = arith.constant 0 : index
    %5 = vector.load %arg2[%c0_6, %c1, %c0_7, %c0_8] : memref<1x8x16x16xf32, #tpu.memory_space<vmem>>, vector<1x1x16x16xf32>
    %6 = vector.shape_cast %5 : vector<1x1x16x16xf32> to vector<16x16xf32>
    %c1_9 = arith.constant 1 : index
    %c0_10 = arith.constant 0 : index
    %c0_11 = arith.constant 0 : index
    %7 = vector.load %arg4[%c1_9, %c0_10, %c0_11] : memref<2x16x32xf32, #tpu.memory_space<vmem>>, vector<1x16x32xf32>
    %8 = vector.shape_cast %7 : vector<1x16x32xf32> to vector<16x32xf32>
    %cst_12 = arith.constant dense<0.000000e+00> : vector<16x32xf32>
    %9 = tpu.matmul %6, %8, %cst_12 {dimension_numbers = #tpu.dot_dimension_numbers<[1], [0], [0], [1], [0, 0, 1, 1], [], []>} : vector<16x16xf32>, vector<16x32xf32>, vector<16x32xf32> -> vector<16x32xf32>
    %10 = arith.addf %4, %9 : vector<16x32xf32>
    %c0_13 = arith.constant 0 : index
    %c0_14 = arith.constant 0 : index
    %c0_15 = arith.constant 0 : index
    %11 = vector.load %arg3[%c0_13, %c0_14, %c0_15] : memref<2x32x16xf32, #tpu.memory_space<vmem>>, vector<1x32x16xf32>
    %12 = vector.shape_cast %11 : vector<1x32x16xf32> to vector<32x16xf32>
    %cst_16 = arith.constant dense<0.000000e+00> : vector<32x32xf32>
    %13 = tpu.matmul %12, %10, %cst_16 {dimension_numbers = #tpu.dot_dimension_numbers<[1], [0], [0], [1], [0, 0, 1, 1], [], []>} : vector<32x16xf32>, vector<16x32xf32>, vector<32x32xf32> -> vector<32x32xf32>
    %c0_17 = arith.constant 0 : index
    %c2 = arith.constant 2 : index
    %c0_18 = arith.constant 0 : index
    %c0_19 = arith.constant 0 : index
    %14 = vector.load %arg2[%c0_17, %c2, %c0_18, %c0_19] : memref<1x8x16x16xf32, #tpu.memory_space<vmem>>, vector<1x1x16x16xf32>
    %15 = vector.shape_cast %14 : vector<1x1x16x16xf32> to vector<16x16xf32>
    %c0_20 = arith.constant 0 : index
    %c0_21 = arith.constant 0 : index
    %c0_22 = arith.constant 0 : index
    %16 = vector.load %arg4[%c0_20, %c0_21, %c0_22] : memref<2x16x32xf32, #tpu.memory_space<vmem>>, vector<1x16x32xf32>
    %17 = vector.shape_cast %16 : vector<1x16x32xf32> to vector<16x32xf32>
    %cst_23 = arith.constant dense<0.000000e+00> : vector<16x32xf32>
    %18 = tpu.matmul %15, %17, %cst_23 {dimension_numbers = #tpu.dot_dimension_numbers<[1], [0], [0], [1], [0, 0, 1, 1], [], []>} : vector<16x16xf32>, vector<16x32xf32>, vector<16x32xf32> -> vector<16x32xf32>
    %c0_24 = arith.constant 0 : index
    %c3 = arith.constant 3 : index
    %c0_25 = arith.constant 0 : index
    %c0_26 = arith.constant 0 : index
    %19 = vector.load %arg2[%c0_24, %c3, %c0_25, %c0_26] : memref<1x8x16x16xf32, #tpu.memory_space<vmem>>, vector<1x1x16x16xf32>
    %20 = vector.shape_cast %19 : vector<1x1x16x16xf32> to vector<16x16xf32>
    %c1_27 = arith.constant 1 : index
    %c0_28 = arith.constant 0 : index
    %c0_29 = arith.constant 0 : index
    %21 = vector.load %arg4[%c1_27, %c0_28, %c0_29] : memref<2x16x32xf32, #tpu.memory_space<vmem>>, vector<1x16x32xf32>
    %22 = vector.shape_cast %21 : vector<1x16x32xf32> to vector<16x32xf32>
    %cst_30 = arith.constant dense<0.000000e+00> : vector<16x32xf32>
    %23 = tpu.matmul %20, %22, %cst_30 {dimension_numbers = #tpu.dot_dimension_numbers<[1], [0], [0], [1], [0, 0, 1, 1], [], []>} : vector<16x16xf32>, vector<16x32xf32>, vector<16x32xf32> -> vector<16x32xf32>
    %24 = arith.addf %18, %23 : vector<16x32xf32>
    %c1_31 = arith.constant 1 : index
    %c0_32 = arith.constant 0 : index
    %c0_33 = arith.constant 0 : index
    %25 = vector.load %arg3[%c1_31, %c0_32, %c0_33] : memref<2x32x16xf32, #tpu.memory_space<vmem>>, vector<1x32x16xf32>
    %26 = vector.shape_cast %25 : vector<1x32x16xf32> to vector<32x16xf32>
    %cst_34 = arith.constant dense<0.000000e+00> : vector<32x32xf32>
    %27 = tpu.matmul %26, %24, %cst_34 {dimension_numbers = #tpu.dot_dimension_numbers<[1], [0], [0], [1], [0, 0, 1, 1], [], []>} : vector<32x16xf32>, vector<16x32xf32>, vector<32x32xf32> -> vector<32x32xf32>
    %28 = arith.addf %13, %27 : vector<32x32xf32>
    %c0_35 = arith.constant 0 : index
    %c0_36 = arith.constant 0 : index
    %c0_37 = arith.constant 0 : index
    %c0_38 = arith.constant 0 : index
    %29 = vector.load %arg5[%c0_35, %c0_36, %c0_37, %c0_38] : memref<1x2x32x32xf32, #tpu.memory_space<vmem>>, vector<1x1x32x32xf32>
    %30 = vector.shape_cast %29 : vector<1x1x32x32xf32> to vector<32x32xf32>
    %31 = vector.shape_cast %28 : vector<32x32xf32> to vector<1x1x32x32xf32>
    tpu.vector_store %arg5[%c0_35, %c0_36, %c0_37, %c0_38], %31 {strides = array<i32>} : memref<1x2x32x32xf32, #tpu.memory_space<vmem>>, vector<1x1x32x32xf32>,
    %c0_39 = arith.constant 0 : index
    %c4 = arith.constant 4 : index
    %c0_40 = arith.constant 0 : index
    %c0_41 = arith.constant 0 : index
    %32 = vector.load %arg2[%c0_39, %c4, %c0_40, %c0_41] : memref<1x8x16x16xf32, #tpu.memory_space<vmem>>, vector<1x1x16x16xf32>
    %33 = vector.shape_cast %32 : vector<1x1x16x16xf32> to vector<16x16xf32>
    %c0_42 = arith.constant 0 : index
    %c0_43 = arith.constant 0 : index
    %c0_44 = arith.constant 0 : index
    %34 = vector.load %arg4[%c0_42, %c0_43, %c0_44] : memref<2x16x32xf32, #tpu.memory_space<vmem>>, vector<1x16x32xf32>
    %35 = vector.shape_cast %34 : vector<1x16x32xf32> to vector<16x32xf32>
    %cst_45 = arith.constant dense<0.000000e+00> : vector<16x32xf32>
    %36 = tpu.matmul %33, %35, %cst_45 {dimension_numbers = #tpu.dot_dimension_numbers<[1], [0], [0], [1], [0, 0, 1, 1], [], []>} : vector<16x16xf32>, vector<16x32xf32>, vector<16x32xf32> -> vector<16x32xf32>
    %c0_46 = arith.constant 0 : index
    %c5 = arith.constant 5 : index
    %c0_47 = arith.constant 0 : index
    %c0_48 = arith.constant 0 : index
    %37 = vector.load %arg2[%c0_46, %c5, %c0_47, %c0_48] : memref<1x8x16x16xf32, #tpu.memory_space<vmem>>, vector<1x1x16x16xf32>
    %38 = vector.shape_cast %37 : vector<1x1x16x16xf32> to vector<16x16xf32>
    %c1_49 = arith.constant 1 : index
    %c0_50 = arith.constant 0 : index
    %c0_51 = arith.constant 0 : index
    %39 = vector.load %arg4[%c1_49, %c0_50, %c0_51] : memref<2x16x32xf32, #tpu.memory_space<vmem>>, vector<1x16x32xf32>
    %40 = vector.shape_cast %39 : vector<1x16x32xf32> to vector<16x32xf32>
    %cst_52 = arith.constant dense<0.000000e+00> : vector<16x32xf32>
    %41 = tpu.matmul %38, %40, %cst_52 {dimension_numbers = #tpu.dot_dimension_numbers<[1], [0], [0], [1], [0, 0, 1, 1], [], []>} : vector<16x16xf32>, vector<16x32xf32>, vector<16x32xf32> -> vector<16x32xf32>
    %42 = arith.addf %36, %41 : vector<16x32xf32>
    %c0_53 = arith.constant 0 : index
    %c0_54 = arith.constant 0 : index
    %c0_55 = arith.constant 0 : index
    %43 = vector.load %arg3[%c0_53, %c0_54, %c0_55] : memref<2x32x16xf32, #tpu.memory_space<vmem>>, vector<1x32x16xf32>
    %44 = vector.shape_cast %43 : vector<1x32x16xf32> to vector<32x16xf32>
    %cst_56 = arith.constant dense<0.000000e+00> : vector<32x32xf32>
    %45 = tpu.matmul %44, %42, %cst_56 {dimension_numbers = #tpu.dot_dimension_numbers<[1], [0], [0], [1], [0, 0, 1, 1], [], []>} : vector<32x16xf32>, vector<16x32xf32>, vector<32x32xf32> -> vector<32x32xf32>
    %c0_57 = arith.constant 0 : index
    %c6 = arith.constant 6 : index
    %c0_58 = arith.constant 0 : index
    %c0_59 = arith.constant 0 : index
    %46 = vector.load %arg2[%c0_57, %c6, %c0_58, %c0_59] : memref<1x8x16x16xf32, #tpu.memory_space<vmem>>, vector<1x1x16x16xf32>
    %47 = vector.shape_cast %46 : vector<1x1x16x16xf32> to vector<16x16xf32>
    %c0_60 = arith.constant 0 : index
    %c0_61 = arith.constant 0 : index
    %c0_62 = arith.constant 0 : index
    %48 = vector.load %arg4[%c0_60, %c0_61, %c0_62] : memref<2x16x32xf32, #tpu.memory_space<vmem>>, vector<1x16x32xf32>
    %49 = vector.shape_cast %48 : vector<1x16x32xf32> to vector<16x32xf32>
    %cst_63 = arith.constant dense<0.000000e+00> : vector<16x32xf32>
    %50 = tpu.matmul %47, %49, %cst_63 {dimension_numbers = #tpu.dot_dimension_numbers<[1], [0], [0], [1], [0, 0, 1, 1], [], []>} : vector<16x16xf32>, vector<16x32xf32>, vector<16x32xf32> -> vector<16x32xf32>
    %c0_64 = arith.constant 0 : index
    %c7 = arith.constant 7 : index
    %c0_65 = arith.constant 0 : index
    %c0_66 = arith.constant 0 : index
    %51 = vector.load %arg2[%c0_64, %c7, %c0_65, %c0_66] : memref<1x8x16x16xf32, #tpu.memory_space<vmem>>, vector<1x1x16x16xf32>
    %52 = vector.shape_cast %51 : vector<1x1x16x16xf32> to vector<16x16xf32>
    %c1_67 = arith.constant 1 : index
    %c0_68 = arith.constant 0 : index
    %c0_69 = arith.constant 0 : index
    %53 = vector.load %arg4[%c1_67, %c0_68, %c0_69] : memref<2x16x32xf32, #tpu.memory_space<vmem>>, vector<1x16x32xf32>
    %54 = vector.shape_cast %53 : vector<1x16x32xf32> to vector<16x32xf32>
    %cst_70 = arith.constant dense<0.000000e+00> : vector<16x32xf32>
    %55 = tpu.matmul %52, %54, %cst_70 {dimension_numbers = #tpu.dot_dimension_numbers<[1], [0], [0], [1], [0, 0, 1, 1], [], []>} : vector<16x16xf32>, vector<16x32xf32>, vector<16x32xf32> -> vector<16x32xf32>
    %56 = arith.addf %50, %55 : vector<16x32xf32>
    %c1_71 = arith.constant 1 : index
    %c0_72 = arith.constant 0 : index
    %c0_73 = arith.constant 0 : index
    %57 = vector.load %arg3[%c1_71, %c0_72, %c0_73] : memref<2x32x16xf32, #tpu.memory_space<vmem>>, vector<1x32x16xf32>
    %58 = vector.shape_cast %57 : vector<1x32x16xf32> to vector<32x16xf32>
    %cst_74 = arith.constant dense<0.000000e+00> : vector<32x32xf32>
    %59 = tpu.matmul %58, %56, %cst_74 {dimension_numbers = #tpu.dot_dimension_numbers<[1], [0], [0], [1], [0, 0, 1, 1], [], []>} : vector<32x16xf32>, vector<16x32xf32>, vector<32x32xf32> -> vector<32x32xf32>
    %60 = arith.addf %45, %59 : vector<32x32xf32>
    %c0_75 = arith.constant 0 : index
    %c1_76 = arith.constant 1 : index
    %c0_77 = arith.constant 0 : index
    %c0_78 = arith.constant 0 : index
    %61 = vector.load %arg5[%c0_75, %c1_76, %c0_77, %c0_78] : memref<1x2x32x32xf32, #tpu.memory_space<vmem>>, vector<1x1x32x32xf32>
    %62 = vector.shape_cast %61 : vector<1x1x32x32xf32> to vector<32x32xf32>
    %63 = vector.shape_cast %60 : vector<32x32xf32> to vector<1x1x32x32xf32>
    tpu.vector_store %arg5[%c0_75, %c1_76, %c0_77, %c0_78], %63 {strides = array<i32>} : memref<1x2x32x32xf32, #tpu.memory_space<vmem>>, vector<1x1x32x32xf32>,
    return
  }
  func.func @transform_0(%arg0: i32, %arg1: i32) -> (i32, i32, i32, i32) {
    %c0_i32 = arith.constant 0 : i32
    %c0_i32_0 = arith.constant 0 : i32
    %c0_i32_1 = arith.constant 0 : i32
    return %arg0, %arg1, %c0_i32, %c0_i32_0 : i32, i32, i32, i32
  }
  func.func @transform_1(%arg0: i32, %arg1: i32) -> (i32, i32, i32) {
    %c0_i32 = arith.constant 0 : i32
    %c0_i32_0 = arith.constant 0 : i32
    %c0_i32_1 = arith.constant 0 : i32
    %c0_i32_2 = arith.constant 0 : i32
    return %c0_i32, %c0_i32_0, %c0_i32_1 : i32, i32, i32
  }
  func.func @transform_2(%arg0: i32, %arg1: i32) -> (i32, i32, i32) {
    %c0_i32 = arith.constant 0 : i32
    %c0_i32_0 = arith.constant 0 : i32
    %c0_i32_1 = arith.constant 0 : i32
    %c0_i32_2 = arith.constant 0 : i32
    return %c0_i32, %c0_i32_0, %c0_i32_1 : i32, i32, i32
  }
  func.func @transform_3(%arg0: i32, %arg1: i32) -> (i32, i32, i32, i32) {
    %c0_i32 = arith.constant 0 : i32
    %c0_i32_0 = arith.constant 0 : i32
    %c0_i32_1 = arith.constant 0 : i32
    return %arg0, %arg1, %c0_i32, %c0_i32_0 : i32, i32, i32, i32
  }
}

</mosaic_0001>

<llo_original>
// kernel: tpu_custom_call.1
$region0: #{tpu_custom_call.1}
  #allocation0 [shape = 'u32[]', space=smem, size = 0x4, offset = 0x4, fixed_abs, tag = 'smem constant byte address 0x4 - core index']
  #allocation1 [shape = 'u32[72,128]{1,0:T(1,128)}', space=vmem, size = 0x9000, scoped, tag = 'internal scratch']
  %s0 = inlined_call_operand.hbm [shape: f32[2,8,16,16], index: 0, kind: input, shape index: {}]
  %s1 = inlined_call_operand.vmem [shape: f32[2,32,16], index: 1, kind: input, shape index: {}]
  %s2 = inlined_call_operand.vmem [shape: f32[2,16,32], index: 2, kind: input, shape index: {}]
  %s3 = inlined_call_operand.hbm [shape: f32[2,2,32,32], index: 3, kind: output, shape index: {}]
  %s4 = sld [smem:[#allocation0]]
  $region49: #{tpu_custom_call.1} parent=0
    _
  %s6 = ssub.s32 1, %s4
  %s7 = scalar_select 0, %s6, %s4
  $region1: #{tpu_custom_call.1} parent=0
    #allocation2 [shape = 'u8[131072]{0}', space=vmem, size = 0x20000, scoped, tag = 'input window, operand 0']
    #allocation3 [shape = 's32[2]{0}', space=sflag, size = 0x8, scoped, tag = 'scoped memory for tpu_custom_call.1']
    #allocation4 [shape = 's32[2]{0}', space=sflag, size = 0x8, scoped, tag = 'scoped memory for tpu_custom_call.1']
    #allocation5 [shape = 'u8[65536]{0}', space=vmem, size = 0x10000, scoped, tag = 'output window, operand 0']
    %8 = vsyncpa [#allocation3], 0
    %s9 = scalar_lea.sflag [#allocation3], 1
    %10 = vsyncpa %s9, 0
    %11 = vsyncpa [#allocation4], 0
    %s12 = scalar_lea.sflag [#allocation4], 1
    %13 = vsyncpa %s12, 0
    loop: start=0, step=1, limit=4
    $region2: #{tpu_custom_call.1} parent=1 // loop_pre_header
      _
    $region3: #{tpu_custom_call.1} parent=1 // loop_header
      %s15 = sphi 0, %s19
      %p16 = scmp.ge.s32.totalorder %s15, 4
      %s22 = sphi 0, %s34
      %s23 = sphi 0, %s30
      %s24 = sphi 0, %s22
      %s25 = sphi 0, %s23
      %s26 = sphi 0, %s24
      %s27 = sphi 0, %s25
      %s39 = sphi 0, %s41
      %s42 = sphi 0, %s39
      %s43 = sphi 0, %s42
      %s59 = sphi 0, %s43
      %s63 = sphi 0, %s63
      %s65 = sphi 0, %s63
      %s66 = sphi 0, %s65
      %s80 = sphi 0, %s66
      %s84 = sphi 0, %s84
      %s86 = sphi 0, %s84
      %s87 = sphi 0, %s86
      %s101 = sphi 0, %s87
      %s109 = sphi 0, %s111
      %s112 = sphi 0, %s109
      %s113 = sphi 0, %s112
      %s129 = sphi 0, %s113
    $region4: #{tpu_custom_call.1} parent=1 // loop_header_branch
      %18 = sbr.rel (%p16) target = $region8
    $region5: #{tpu_custom_call.1} parent=1 // loop_body
      %s20 = ssub.s32 %s15, 1
      %s21 = ssub.s32 %s15, 2
      %s28 = sadd.s32 1, %s23
      %p29 = scmp.ge.s32.totalorder %s28, 1
      %s30 = scalar_select %p29, 0, %s28
      %s31 = sadd.s32 1, %s22
      %s32 = scalar_select %p29, %s31, %s22
      %p33 = scmp.ge.s32.totalorder %s32, 2
      %s34 = scalar_select %p33, 0, %s32
      %s35 = ssub.s32 %s22, %s34
      %s36 = ssub.s32 %s23, %s30
      %s37 = sor.u32 %s35, %s36
      %p38 = scmp.eq.s32.totalorder %s37, 0
      %s40 = sadd.s32 %s39, 1
      %s41 = scalar_select %p38, %s39, %s40
      %p44 = pneg %p38
      %p45 = scmp.eq.s32.totalorder %s15, 1
      %p46 = por %p44, %p45
      %p47 = scmp.ne.s32.totalorder %s39, %s42
      %p48 = scmp.eq.s32.totalorder %s15, 0
      %p49 = por %p47, %p48
      %p50 = scmp.ne.s32.totalorder %s39, %s42
      %p51 = scmp.eq.s32.totalorder %s20, 1
      %p52 = por %p50, %p51
      %p53 = scmp.ne.s32.totalorder %s42, %s43
      %p54 = scmp.eq.s32.totalorder %s20, 0
      %p55 = por %p53, %p54
      %p56 = scmp.ne.s32.totalorder %s42, %s43
      %p57 = scmp.eq.s32.totalorder %s21, 1
      %p58 = por %p56, %p57
      %p60 = scmp.ne.s32.totalorder %s43, %s59
      %p61 = scmp.eq.s32.totalorder %s21, 0
      %p62 = por %p60, %p61
      %s64 = sadd.s32 %s63, 1
      %p67 = scmp.eq.s32.totalorder %s15, 1
      %p68 = scmp.ne.s32.totalorder %s63, %s65
      %p69 = scmp.eq.s32.totalorder %s15, 0
      %p70 = por %p68, %p69
      %p71 = scmp.ne.s32.totalorder %s63, %s65
      %p72 = scmp.eq.s32.totalorder %s20, 1
      %p73 = por %p71, %p72
      %p74 = scmp.ne.s32.totalorder %s65, %s66
      %p75 = scmp.eq.s32.totalorder %s20, 0
      %p76 = por %p74, %p75
      %p77 = scmp.ne.s32.totalorder %s65, %s66
      %p78 = scmp.eq.s32.totalorder %s21, 1
      %p79 = por %p77, %p78
      %p81 = scmp.ne.s32.totalorder %s66, %s80
      %p82 = scmp.eq.s32.totalorder %s21, 0
      %p83 = por %p81, %p82
      %s85 = sadd.s32 %s84, 1
      %p88 = scmp.eq.s32.totalorder %s15, 1
      %p89 = scmp.ne.s32.totalorder %s84, %s86
      %p90 = scmp.eq.s32.totalorder %s15, 0
      %p91 = por %p89, %p90
      %p92 = scmp.ne.s32.totalorder %s84, %s86
      %p93 = scmp.eq.s32.totalorder %s20, 1
      %p94 = por %p92, %p93
      %p95 = scmp.ne.s32.totalorder %s86, %s87
      %p96 = scmp.eq.s32.totalorder %s20, 0
      %p97 = por %p95, %p96
      %p98 = scmp.ne.s32.totalorder %s86, %s87
      %p99 = scmp.eq.s32.totalorder %s21, 1
      %p100 = por %p98, %p99
      %p102 = scmp.ne.s32.totalorder %s87, %s101
      %p103 = scmp.eq.s32.totalorder %s21, 0
      %p104 = por %p102, %p103
      %s105 = ssub.s32 %s22, %s34
      %s106 = ssub.s32 %s23, %s30
      %s107 = sor.u32 %s105, %s106
      %p108 = scmp.eq.s32.totalorder %s107, 0
      %s110 = sadd.s32 %s109, 1
      %s111 = scalar_select %p108, %s109, %s110
      %p114 = pneg %p108
      %p115 = scmp.eq.s32.totalorder %s15, 1
      %p116 = por %p114, %p115
      %p117 = scmp.ne.s32.totalorder %s109, %s112
      %p118 = scmp.eq.s32.totalorder %s15, 0
      %p119 = por %p117, %p118
      %p120 = scmp.ne.s32.totalorder %s109, %s112
      %p121 = scmp.eq.s32.totalorder %s20, 1
      %p122 = por %p120, %p121
      %p123 = scmp.ne.s32.totalorder %s112, %s113
      %p124 = scmp.eq.s32.totalorder %s20, 0
      %p125 = por %p123, %p124
      %p126 = scmp.ne.s32.totalorder %s112, %s113
      %p127 = scmp.eq.s32.totalorder %s21, 1
      %p128 = por %p126, %p127
      %p130 = scmp.ne.s32.totalorder %s113, %s129
      %p131 = scmp.eq.s32.totalorder %s21, 0
      %p132 = por %p130, %p131
      %p133 = scmp.le.s32.totalorder 1, %s15
      %p134 = scmp.lt.s32.totalorder %s15, 3
      %p135 = pnand %p133, %p134
      %p136 = pneg %p135
      // Predicated region
      $region9: #{tpu_custom_call.1} parent=5 // pred_check
        _
      $region10: #{tpu_custom_call.1} parent=5 // pred_check_branch
        %138 = sbr.rel (%p135) target = $region12
      $region11: #{tpu_custom_call.1} parent=5 // pred_region
        %s139 = ssub.s32 %s15, 1
        // Predicated region
        $region13: #{tpu_custom_call.1} parent=11 // pred_check
          %p140 = pneg %p76
        $region14: #{tpu_custom_call.1} parent=11 // pred_check_branch
          %142 = sbr.rel (%p140) target = $region16
        $region15: #{tpu_custom_call.1} parent=11 // pred_region
          _
        $region16: #{tpu_custom_call.1} parent=11 // pred_fallthru
          _
        // Predicated region
        $region17: #{tpu_custom_call.1} parent=11 // pred_check
          %p143 = pneg %p97
        $region18: #{tpu_custom_call.1} parent=11 // pred_check_branch
          %145 = sbr.rel (%p143) target = $region20
        $region19: #{tpu_custom_call.1} parent=11 // pred_region
          _
        $region20: #{tpu_custom_call.1} parent=11 // pred_fallthru
          _
      $region12: #{tpu_custom_call.1} parent=5 // pred_fallthru
        _
      %p146 = scmp.lt.s32.totalorder %s15, 2
      // Predicated region
      $region21: #{tpu_custom_call.1} parent=5 // pred_check
        %p147 = pneg %p146
      $region22: #{tpu_custom_call.1} parent=5 // pred_check_branch
        %149 = sbr.rel (%p147) target = $region24
      $region23: #{tpu_custom_call.1} parent=5 // pred_region
        // Predicated region
        $region25: #{tpu_custom_call.1} parent=23 // pred_check
          %p150 = pneg %p49
        $region26: #{tpu_custom_call.1} parent=23 // pred_check_branch
          %152 = sbr.rel (%p150) target = $region28
        $region27: #{tpu_custom_call.1} parent=23 // pred_region
          %s153 = sand.u32 %s39, 1
          %s154 = scalar_lea.sflag [#allocation3], %s153
          %s155 = sand.u32 %s39, 1
          %s156 = smul.addr %s155, 128
          %s157 = scalar_lea.vmem [#allocation2], %s156
          %s158 = smul.u32 8, %s23
          %160 = vsyncadd %s154, 0
          %s161 = smul.addr %s158, 2
          %s162 = smul.addr %s22, 16
          %s163 = sadd.s32 %s161, %s162
          %s164 = smul.addr %s163, 8
          %s165 = scalar_lea.hbm %s0, %s164
          %s166 = sshll.u32 %s165, 4
          %s167 = int_to_ptr.hbm [resolvable:$true] %s166
          %s168 = sshll.u32 %s157, 4
          %s169 = int_to_ptr.vmem [resolvable:$true] %s168
          %174 = dma.hbm_to_vmem [thread:$0]  %s167, 2048, %s169, %s154, 128, 128, 8
        $region28: #{tpu_custom_call.1} parent=23 // pred_fallthru
          _
      $region24: #{tpu_custom_call.1} parent=5 // pred_fallthru
        _
      %p175 = scmp.le.s32.totalorder 1, %s15
      %p176 = scmp.lt.s32.totalorder %s15, 3
      %p177 = pnand %p175, %p176
      %p178 = pneg %p177
      // Predicated region
      $region29: #{tpu_custom_call.1} parent=5 // pred_check
        _
      $region30: #{tpu_custom_call.1} parent=5 // pred_check_branch
        %180 = sbr.rel (%p177) target = $region32
      $region31: #{tpu_custom_call.1} parent=5 // pred_region
        %s181 = ssub.s32 %s15, 1
        %s182 = sand.u32 %s42, 1
        %s183 = scalar_lea.sflag [#allocation3], %s182
        %s184 = sand.u32 %s42, 1
        %s185 = smul.addr %s184, 128
        %s186 = scalar_lea.vmem [#allocation2], %s185
        // Predicated region
        $region33: #{tpu_custom_call.1} parent=31 // pred_check
          %p187 = pneg %p55
        $region34: #{tpu_custom_call.1} parent=31 // pred_check_branch
          %189 = sbr.rel (%p187) target = $region36
        $region35: #{tpu_custom_call.1} parent=31 // pred_region
          %191 = dma.done %s183, 2048
        $region36: #{tpu_custom_call.1} parent=31 // pred_fallthru
          _
        %s192 = sand.u32 %s42, 1
        %s193 = scalar_lea.sflag [#allocation3], %s192
        %s194 = sand.u32 %s42, 1
        %s195 = smul.addr %s194, 128
        %s196 = scalar_lea.vmem [#allocation2], %s195
        %p197 = pneg %p55
        %p198 = pneg %p52
        %p199 = pneg %p76
        %p200 = pneg %p73
        %p201 = pneg %p97
        %p202 = pneg %p94
        %p203 = pneg %p125
        %p204 = pneg %p122
        %s205 = sand.u32 %s112, 1
        %s206 = scalar_lea.sflag [#allocation4], %s205
        %s207 = sand.u32 %s112, 1
        %s208 = smul.addr %s207, 64
        %s209 = scalar_lea.vmem [#allocation5], %s208
        %s210 = smul.u32 8, %s25
        %s211 = smul.u32 2, %s25
        %v212 = vld [vmem:[%s186] sm:$0xff]
        %v213 = vld [vmem:[%s186 + $0x8] sm:$0xff]
        %v214 = vld [vmem:[%s2] sm:$0xff]
        %v215 = vld [vmem:[%s2 + $0x8] sm:$0xff]
        %s216 = scalar_lea.vmem %s186, 16 [#allocation2]
        %v217 = vld [vmem:[%s216] sm:$0xff]
        %v218 = vld [vmem:[%s216 + $0x8] sm:$0xff]
        %s219 = scalar_lea.vmem %s2, 16
        %v220 = vld [vmem:[%s219] sm:$0xff]
        %v221 = vld [vmem:[%s219 + $0x8] sm:$0xff]
        %vm222 = vcmask 130048
        %v224 = vsel %vm222, %v217, 0
        %v227 = vsel %vm222, %v218, 0
        %229 = vmatpush.msra.mxu0 0.0
        %230 = vmatpush.msra.mxu0 0.0
        %231 = vmatpush.msra.mxu0 0.0
        %232 = vmatpush.msra.mxu0 0.0
        %233 = vmatpush.msra.mxu0 0.0
        %234 = vmatpush.msra.mxu0 0.0
        %235 = vmatpush.msra.mxu0 0.0
        %236 = vmatpush.msra.mxu0 0.0
        %237 = vmatpush.msra.mxu0 0.0
        %238 = vmatpush.msra.mxu0 0.0
        %239 = vmatpush.msra.mxu0 0.0
        %240 = vmatpush.msra.mxu0 0.0
        %241 = vmatpush.msra.mxu0 0.0
        %242 = vmatpush.msra.mxu0 0.0
        %243 = vmatpush.msra.mxu0 %v221
        %244 = vmatpush.msra.mxu0 %v220
        %245 = vmatmul.f32.gmra.mxu0 %v224
        %v246 = vpop.f32.mrf.mxu0
        %v247 = vadd.f32 0.0, %v246
        %248 = vmatmul.f32.gmra.mxu0 %v227
        %v249 = vpop.f32.mrf.mxu0
        %v250 = vadd.f32 0.0, %v249
        %251 = vdwg.mxu0
        %v253 = vsel %vm222, %v212, 0
        %v256 = vsel %vm222, %v213, 0
        %258 = vmatpush.msra.mxu0 0.0
        %259 = vmatpush.msra.mxu0 0.0
        %260 = vmatpush.msra.mxu0 0.0
        %261 = vmatpush.msra.mxu0 0.0
        %262 = vmatpush.msra.mxu0 0.0
        %263 = vmatpush.msra.mxu0 0.0
        %264 = vmatpush.msra.mxu0 0.0
        %265 = vmatpush.msra.mxu0 0.0
        %266 = vmatpush.msra.mxu0 0.0
        %267 = vmatpush.msra.mxu0 0.0
        %268 = vmatpush.msra.mxu0 0.0
        %269 = vmatpush.msra.mxu0 0.0
        %270 = vmatpush.msra.mxu0 0.0
        %271 = vmatpush.msra.mxu0 0.0
        %272 = vmatpush.msra.mxu0 %v215
        %273 = vmatpush.msra.mxu0 %v214
        %274 = vmatmul.f32.gmra.mxu0 %v253
        %v275 = vpop.f32.mrf.mxu0
        %v276 = vadd.f32 %v247, %v275
        %277 = vmatmul.f32.gmra.mxu0 %v256
        %v278 = vpop.f32.mrf.mxu0
        %v279 = vadd.f32 %v250, %v278
        %280 = vdwg.mxu0
        %v281 = vld [vmem:[%s1] sm:$0xff]
        %v282 = vld [vmem:[%s1 + $0x8] sm:$0xff]
        %v283 = vld [vmem:[%s1 + $0x10] sm:$0xff]
        %v284 = vld [vmem:[%s1 + $0x18] sm:$0xff]
        %s285 = scalar_lea.vmem %s186, 32 [#allocation2]
        %v286 = vld [vmem:[%s285] sm:$0xff]
        %v287 = vld [vmem:[%s285 + $0x8] sm:$0xff]
        %s288 = scalar_lea.vmem %s186, 48 [#allocation2]
        %v289 = vld [vmem:[%s288] sm:$0xff]
        %v290 = vld [vmem:[%s288 + $0x8] sm:$0xff]
        %v292 = vsel %vm222, %v289, 0
        %v295 = vsel %vm222, %v290, 0
        %297 = vmatpush.msra.mxu0 0.0
        %298 = vmatpush.msra.mxu0 0.0
        %299 = vmatpush.msra.mxu0 0.0
        %300 = vmatpush.msra.mxu0 0.0
        %301 = vmatpush.msra.mxu0 0.0
        %302 = vmatpush.msra.mxu0 0.0
        %303 = vmatpush.msra.mxu0 0.0
        %304 = vmatpush.msra.mxu0 0.0
        %305 = vmatpush.msra.mxu0 0.0
        %306 = vmatpush.msra.mxu0 0.0
        %307 = vmatpush.msra.mxu0 0.0
        %308 = vmatpush.msra.mxu0 0.0
        %309 = vmatpush.msra.mxu0 0.0
        %310 = vmatpush.msra.mxu0 0.0
        %311 = vmatpush.msra.mxu0 %v221
        %312 = vmatpush.msra.mxu0 %v220
        %313 = vmatmul.f32.gmra.mxu0 %v292
        %v314 = vpop.f32.mrf.mxu0
        %v315 = vadd.f32 0.0, %v314
        %316 = vmatmul.f32.gmra.mxu0 %v295
        %v317 = vpop.f32.mrf.mxu0
        %v318 = vadd.f32 0.0, %v317
        %319 = vdwg.mxu0
        %v321 = vsel %vm222, %v286, 0
        %v324 = vsel %vm222, %v287, 0
        %326 = vmatpush.msra.mxu0 0.0
        %327 = vmatpush.msra.mxu0 0.0
        %328 = vmatpush.msra.mxu0 0.0
        %329 = vmatpush.msra.mxu0 0.0
        %330 = vmatpush.msra.mxu0 0.0
        %331 = vmatpush.msra.mxu0 0.0
        %332 = vmatpush.msra.mxu0 0.0
        %333 = vmatpush.msra.mxu0 0.0
        %334 = vmatpush.msra.mxu0 0.0
        %335 = vmatpush.msra.mxu0 0.0
        %336 = vmatpush.msra.mxu0 0.0
        %337 = vmatpush.msra.mxu0 0.0
        %338 = vmatpush.msra.mxu0 0.0
        %339 = vmatpush.msra.mxu0 0.0
        %340 = vmatpush.msra.mxu0 %v215
        %341 = vmatpush.msra.mxu0 %v214
        %342 = vmatmul.f32.gmra.mxu0 %v321
        %v343 = vpop.f32.mrf.mxu0
        %v344 = vadd.f32 %v315, %v343
        %345 = vmatmul.f32.gmra.mxu0 %v324
        %v346 = vpop.f32.mrf.mxu0
        %v347 = vadd.f32 %v318, %v346
        %348 = vdwg.mxu0
        %s349 = scalar_lea.vmem %s1, 32
        %v350 = vld [vmem:[%s349] sm:$0xff]
        %v351 = vld [vmem:[%s349 + $0x8] sm:$0xff]
        %v352 = vld [vmem:[%s349 + $0x10] sm:$0xff]
        %v353 = vld [vmem:[%s349 + $0x18] sm:$0xff]
        %v355 = vsel %vm222, %v350, 0
        %v358 = vsel %vm222, %v351, 0
        %v361 = vsel %vm222, %v352, 0
        %v364 = vsel %vm222, %v353, 0
        %366 = vmatpush.msra.mxu0 0.0
        %367 = vmatpush.msra.mxu0 0.0
        %368 = vmatpush.msra.mxu0 0.0
        %369 = vmatpush.msra.mxu0 0.0
        %370 = vmatpush.msra.mxu0 0.0
        %371 = vmatpush.msra.mxu0 0.0
        %372 = vmatpush.msra.mxu0 0.0
        %373 = vmatpush.msra.mxu0 0.0
        %374 = vmatpush.msra.mxu0 0.0
        %375 = vmatpush.msra.mxu0 0.0
        %376 = vmatpush.msra.mxu0 0.0
        %377 = vmatpush.msra.mxu0 0.0
        %378 = vmatpush.msra.mxu0 0.0
        %379 = vmatpush.msra.mxu0 0.0
        %380 = vmatpush.msra.mxu0 %v347
        %381 = vmatpush.msra.mxu0 %v344
        %382 = vmatmul.f32.gmra.mxu0 %v355
        %v383 = vpop.f32.mrf.mxu0
        %v384 = vadd.f32 0.0, %v383
        %385 = vmatmul.f32.gmra.mxu0 %v358
        %v386 = vpop.f32.mrf.mxu0
        %v387 = vadd.f32 0.0, %v386
        %388 = vmatmul.f32.gmra.mxu0 %v361
        %v389 = vpop.f32.mrf.mxu0
        %v390 = vadd.f32 0.0, %v389
        %391 = vmatmul.f32.gmra.mxu0 %v364
        %v392 = vpop.f32.mrf.mxu0
        %v393 = vadd.f32 0.0, %v392
        %394 = vdwg.mxu0
        %v396 = vsel %vm222, %v281, 0
        %v399 = vsel %vm222, %v282, 0
        %v402 = vsel %vm222, %v283, 0
        %v405 = vsel %vm222, %v284, 0
        %407 = vmatpush.msra.mxu0 0.0
        %408 = vmatpush.msra.mxu0 0.0
        %409 = vmatpush.msra.mxu0 0.0
        %410 = vmatpush.msra.mxu0 0.0
        %411 = vmatpush.msra.mxu0 0.0
        %412 = vmatpush.msra.mxu0 0.0
        %413 = vmatpush.msra.mxu0 0.0
        %414 = vmatpush.msra.mxu0 0.0
        %415 = vmatpush.msra.mxu0 0.0
        %416 = vmatpush.msra.mxu0 0.0
        %417 = vmatpush.msra.mxu0 0.0
        %418 = vmatpush.msra.mxu0 0.0
        %419 = vmatpush.msra.mxu0 0.0
        %420 = vmatpush.msra.mxu0 0.0
        %421 = vmatpush.msra.mxu0 %v279
        %422 = vmatpush.msra.mxu0 %v276
        %423 = vmatmul.f32.gmra.mxu0 %v396
        %v424 = vpop.f32.mrf.mxu0
        %v425 = vadd.f32 %v384, %v424
        %426 = vmatmul.f32.gmra.mxu0 %v399
        %v427 = vpop.f32.mrf.mxu0
        %v428 = vadd.f32 %v387, %v427
        %429 = vmatmul.f32.gmra.mxu0 %v402
        %v430 = vpop.f32.mrf.mxu0
        %v431 = vadd.f32 %v390, %v430
        %432 = vmatmul.f32.gmra.mxu0 %v405
        %v433 = vpop.f32.mrf.mxu0
        %v434 = vadd.f32 %v393, %v433
        %435 = vdwg.mxu0
        %vm436 = vcmask 261120
        %437 = vst.msk [vmem:[%s209] sm:$0xff] %vm436, %v425
        %438 = vst.msk [vmem:[%s209 + $0x8] sm:$0xff] %vm436, %v428
        %439 = vst.msk [vmem:[%s209 + $0x10] sm:$0xff] %vm436, %v431
        %440 = vst.msk [vmem:[%s209 + $0x18] sm:$0xff] %vm436, %v434
        %s441 = scalar_lea.vmem %s186, 64 [#allocation2]
        %v442 = vld [vmem:[%s441] sm:$0xff]
        %v443 = vld [vmem:[%s441 + $0x8] sm:$0xff]
        %v444 = vld [vmem:[%s2] sm:$0xff]
        %v445 = vld [vmem:[%s2 + $0x8] sm:$0xff]
        %s446 = scalar_lea.vmem %s186, 80 [#allocation2]
        %v447 = vld [vmem:[%s446] sm:$0xff]
        %v448 = vld [vmem:[%s446 + $0x8] sm:$0xff]
        %v449 = vld [vmem:[%s219] sm:$0xff]
        %v450 = vld [vmem:[%s219 + $0x8] sm:$0xff]
        %v452 = vsel %vm222, %v447, 0
        %v455 = vsel %vm222, %v448, 0
        %457 = vmatpush.msra.mxu0 0.0
        %458 = vmatpush.msra.mxu0 0.0
        %459 = vmatpush.msra.mxu0 0.0
        %460 = vmatpush.msra.mxu0 0.0
        %461 = vmatpush.msra.mxu0 0.0
        %462 = vmatpush.msra.mxu0 0.0
        %463 = vmatpush.msra.mxu0 0.0
        %464 = vmatpush.msra.mxu0 0.0
        %465 = vmatpush.msra.mxu0 0.0
        %466 = vmatpush.msra.mxu0 0.0
        %467 = vmatpush.msra.mxu0 0.0
        %468 = vmatpush.msra.mxu0 0.0
        %469 = vmatpush.msra.mxu0 0.0
        %470 = vmatpush.msra.mxu0 0.0
        %471 = vmatpush.msra.mxu0 %v450
        %472 = vmatpush.msra.mxu0 %v449
        %473 = vmatmul.f32.gmra.mxu0 %v452
        %v474 = vpop.f32.mrf.mxu0
        %v475 = vadd.f32 0.0, %v474
        %476 = vmatmul.f32.gmra.mxu0 %v455
        %v477 = vpop.f32.mrf.mxu0
        %v478 = vadd.f32 0.0, %v477
        %479 = vdwg.mxu0
        %v481 = vsel %vm222, %v442, 0
        %v484 = vsel %vm222, %v443, 0
        %486 = vmatpush.msra.mxu0 0.0
        %487 = vmatpush.msra.mxu0 0.0
        %488 = vmatpush.msra.mxu0 0.0
        %489 = vmatpush.msra.mxu0 0.0
        %490 = vmatpush.msra.mxu0 0.0
        %491 = vmatpush.msra.mxu0 0.0
        %492 = vmatpush.msra.mxu0 0.0
        %493 = vmatpush.msra.mxu0 0.0
        %494 = vmatpush.msra.mxu0 0.0
        %495 = vmatpush.msra.mxu0 0.0
        %496 = vmatpush.msra.mxu0 0.0
        %497 = vmatpush.msra.mxu0 0.0
        %498 = vmatpush.msra.mxu0 0.0
        %499 = vmatpush.msra.mxu0 0.0
        %500 = vmatpush.msra.mxu0 %v445
        %501 = vmatpush.msra.mxu0 %v444
        %502 = vmatmul.f32.gmra.mxu0 %v481
        %v503 = vpop.f32.mrf.mxu0
        %v504 = vadd.f32 %v475, %v503
        %505 = vmatmul.f32.gmra.mxu0 %v484
        %v506 = vpop.f32.mrf.mxu0
        %v507 = vadd.f32 %v478, %v506
        %508 = vdwg.mxu0
        %v509 = vld [vmem:[%s1] sm:$0xff]
        %v510 = vld [vmem:[%s1 + $0x8] sm:$0xff]
        %v511 = vld [vmem:[%s1 + $0x10] sm:$0xff]
        %v512 = vld [vmem:[%s1 + $0x18] sm:$0xff]
        %s513 = scalar_lea.vmem %s186, 96 [#allocation2]
        %v514 = vld [vmem:[%s513] sm:$0xff]
        %v515 = vld [vmem:[%s513 + $0x8] sm:$0xff]
        %s516 = scalar_lea.vmem %s186, 112 [#allocation2]
        %v517 = vld [vmem:[%s516] sm:$0xff]
        %v518 = vld [vmem:[%s516 + $0x8] sm:$0xff]
        %v520 = vsel %vm222, %v517, 0
        %v523 = vsel %vm222, %v518, 0
        %525 = vmatpush.msra.mxu0 0.0
        %526 = vmatpush.msra.mxu0 0.0
        %527 = vmatpush.msra.mxu0 0.0
        %528 = vmatpush.msra.mxu0 0.0
        %529 = vmatpush.msra.mxu0 0.0
        %530 = vmatpush.msra.mxu0 0.0
        %531 = vmatpush.msra.mxu0 0.0
        %532 = vmatpush.msra.mxu0 0.0
        %533 = vmatpush.msra.mxu0 0.0
        %534 = vmatpush.msra.mxu0 0.0
        %535 = vmatpush.msra.mxu0 0.0
        %536 = vmatpush.msra.mxu0 0.0
        %537 = vmatpush.msra.mxu0 0.0
        %538 = vmatpush.msra.mxu0 0.0
        %539 = vmatpush.msra.mxu0 %v450
        %540 = vmatpush.msra.mxu0 %v449
        %541 = vmatmul.f32.gmra.mxu0 %v520
        %v542 = vpop.f32.mrf.mxu0
        %v543 = vadd.f32 0.0, %v542
        %544 = vmatmul.f32.gmra.mxu0 %v523
        %v545 = vpop.f32.mrf.mxu0
        %v546 = vadd.f32 0.0, %v545
        %547 = vdwg.mxu0
        %v549 = vsel %vm222, %v514, 0
        %v552 = vsel %vm222, %v515, 0
        %554 = vmatpush.msra.mxu0 0.0
        %555 = vmatpush.msra.mxu0 0.0
        %556 = vmatpush.msra.mxu0 0.0
        %557 = vmatpush.msra.mxu0 0.0
        %558 = vmatpush.msra.mxu0 0.0
        %559 = vmatpush.msra.mxu0 0.0
        %560 = vmatpush.msra.mxu0 0.0
        %561 = vmatpush.msra.mxu0 0.0
        %562 = vmatpush.msra.mxu0 0.0
        %563 = vmatpush.msra.mxu0 0.0
        %564 = vmatpush.msra.mxu0 0.0
        %565 = vmatpush.msra.mxu0 0.0
        %566 = vmatpush.msra.mxu0 0.0
        %567 = vmatpush.msra.mxu0 0.0
        %568 = vmatpush.msra.mxu0 %v445
        %569 = vmatpush.msra.mxu0 %v444
        %570 = vmatmul.f32.gmra.mxu0 %v549
        %v571 = vpop.f32.mrf.mxu0
        %v572 = vadd.f32 %v543, %v571
        %573 = vmatmul.f32.gmra.mxu0 %v552
        %v574 = vpop.f32.mrf.mxu0
        %v575 = vadd.f32 %v546, %v574
        %576 = vdwg.mxu0
        %v577 = vld [vmem:[%s349] sm:$0xff]
        %v578 = vld [vmem:[%s349 + $0x8] sm:$0xff]
        %v579 = vld [vmem:[%s349 + $0x10] sm:$0xff]
        %v580 = vld [vmem:[%s349 + $0x18] sm:$0xff]
        %v582 = vsel %vm222, %v577, 0
        %v585 = vsel %vm222, %v578, 0
        %v588 = vsel %vm222, %v579, 0
        %v591 = vsel %vm222, %v580, 0
        %593 = vmatpush.msra.mxu0 0.0
        %594 = vmatpush.msra.mxu0 0.0
        %595 = vmatpush.msra.mxu0 0.0
        %596 = vmatpush.msra.mxu0 0.0
        %597 = vmatpush.msra.mxu0 0.0
        %598 = vmatpush.msra.mxu0 0.0
        %599 = vmatpush.msra.mxu0 0.0
        %600 = vmatpush.msra.mxu0 0.0
        %601 = vmatpush.msra.mxu0 0.0
        %602 = vmatpush.msra.mxu0 0.0
        %603 = vmatpush.msra.mxu0 0.0
        %604 = vmatpush.msra.mxu0 0.0
        %605 = vmatpush.msra.mxu0 0.0
        %606 = vmatpush.msra.mxu0 0.0
        %607 = vmatpush.msra.mxu0 %v575
        %608 = vmatpush.msra.mxu0 %v572
        %609 = vmatmul.f32.gmra.mxu0 %v582
        %v610 = vpop.f32.mrf.mxu0
        %v611 = vadd.f32 0.0, %v610
        %612 = vmatmul.f32.gmra.mxu0 %v585
        %v613 = vpop.f32.mrf.mxu0
        %v614 = vadd.f32 0.0, %v613
        %615 = vmatmul.f32.gmra.mxu0 %v588
        %v616 = vpop.f32.mrf.mxu0
        %v617 = vadd.f32 0.0, %v616
        %618 = vmatmul.f32.gmra.mxu0 %v591
        %v619 = vpop.f32.mrf.mxu0
        %v620 = vadd.f32 0.0, %v619
        %621 = vdwg.mxu0
        %v623 = vsel %vm222, %v509, 0
        %v626 = vsel %vm222, %v510, 0
        %v629 = vsel %vm222, %v511, 0
        %v632 = vsel %vm222, %v512, 0
        %634 = vmatpush.msra.mxu0 0.0
        %635 = vmatpush.msra.mxu0 0.0
        %636 = vmatpush.msra.mxu0 0.0
        %637 = vmatpush.msra.mxu0 0.0
        %638 = vmatpush.msra.mxu0 0.0
        %639 = vmatpush.msra.mxu0 0.0
        %640 = vmatpush.msra.mxu0 0.0
        %641 = vmatpush.msra.mxu0 0.0
        %642 = vmatpush.msra.mxu0 0.0
        %643 = vmatpush.msra.mxu0 0.0
        %644 = vmatpush.msra.mxu0 0.0
        %645 = vmatpush.msra.mxu0 0.0
        %646 = vmatpush.msra.mxu0 0.0
        %647 = vmatpush.msra.mxu0 0.0
        %648 = vmatpush.msra.mxu0 %v507
        %649 = vmatpush.msra.mxu0 %v504
        %650 = vmatmul.f32.gmra.mxu0 %v623
        %v651 = vpop.f32.mrf.mxu0
        %v652 = vadd.f32 %v611, %v651
        %653 = vmatmul.f32.gmra.mxu0 %v626
        %v654 = vpop.f32.mrf.mxu0
        %v655 = vadd.f32 %v614, %v654
        %656 = vmatmul.f32.gmra.mxu0 %v629
        %v657 = vpop.f32.mrf.mxu0
        %v658 = vadd.f32 %v617, %v657
        %659 = vmatmul.f32.gmra.mxu0 %v632
        %v660 = vpop.f32.mrf.mxu0
        %v661 = vadd.f32 %v620, %v660
        %662 = vdwg.mxu0
        %s663 = scalar_lea.vmem %s209, 32 [#allocation5]
        %664 = vst.msk [vmem:[%s663] sm:$0xff] %vm436, %v652
        %665 = vst.msk [vmem:[%s663 + $0x8] sm:$0xff] %vm436, %v655
        %666 = vst.msk [vmem:[%s663 + $0x10] sm:$0xff] %vm436, %v658
        %667 = vst.msk [vmem:[%s663 + $0x18] sm:$0xff] %vm436, %v661
        %s668 = sand.u32 %s112, 1
        %s669 = scalar_lea.sflag [#allocation4], %s668
        %s670 = sand.u32 %s112, 1
        %s671 = smul.addr %s670, 64
        %s672 = scalar_lea.vmem [#allocation5], %s671
        // Predicated region
        $region37: #{tpu_custom_call.1} parent=31 // pred_check
          %p673 = pneg %p122
        $region38: #{tpu_custom_call.1} parent=31 // pred_check_branch
          %675 = sbr.rel (%p673) target = $region40
        $region39: #{tpu_custom_call.1} parent=31 // pred_region
          %s676 = smul.u32 2, %s25
          %678 = vsyncadd %s669, 0
          %s679 = smul.addr %s676, 4
          %s680 = smul.addr %s24, 8
          %s681 = sadd.s32 %s679, %s680
          %s682 = smul.addr %s681, 8
          %s683 = scalar_lea.hbm %s3, %s682
          %s684 = sshll.u32 %s672, 4
          %s685 = int_to_ptr.vmem [resolvable:$true] %s684
          %s686 = sshll.u32 %s683, 4
          %s687 = int_to_ptr.hbm [resolvable:$true] %s686
          %692 = dma.vmem_to_hbm [thread:$0]  %s685, 1024, %s687, %s669, 128, 128, 8
        $region40: #{tpu_custom_call.1} parent=31 // pred_fallthru
          _
      $region32: #{tpu_custom_call.1} parent=5 // pred_fallthru
        _
      %p693 = scmp.le.s32.totalorder 2, %s15
      // Predicated region
      $region41: #{tpu_custom_call.1} parent=5 // pred_check
        %p694 = pneg %p693
      $region42: #{tpu_custom_call.1} parent=5 // pred_check_branch
        %696 = sbr.rel (%p694) target = $region44
      $region43: #{tpu_custom_call.1} parent=5 // pred_region
        %s697 = ssub.s32 %s15, 2
        // Predicated region
        $region45: #{tpu_custom_call.1} parent=43 // pred_check
          %p698 = pneg %p128
        $region46: #{tpu_custom_call.1} parent=43 // pred_check_branch
          %700 = sbr.rel (%p698) target = $region48
        $region47: #{tpu_custom_call.1} parent=43 // pred_region
          %s701 = sand.u32 %s113, 1
          %s702 = scalar_lea.sflag [#allocation4], %s701
          %s703 = sand.u32 %s113, 1
          %s704 = smul.addr %s703, 64
          %s705 = scalar_lea.vmem [#allocation5], %s704
          %707 = dma.done %s702, 1024
        $region48: #{tpu_custom_call.1} parent=43 // pred_fallthru
          _
      $region44: #{tpu_custom_call.1} parent=5 // pred_fallthru
        _
    $region6: #{tpu_custom_call.1} parent=1 // loop_footer
      %s19 = sadd.s32 1, %s15
    $region7: #{tpu_custom_call.1} parent=1 // loop_footer_branch
      %14 = sbr.rel target = $region3
    $region8: #{tpu_custom_call.1} parent=1 // loop_exit
      _
    %708 = vsyncpa [#allocation3], 1
    %s709 = scalar_lea.sflag [#allocation3], 1
    %710 = vsyncpa %s709, 1
    %711 = vsyncpa [#allocation4], 1
    %s712 = scalar_lea.sflag [#allocation4], 1
    %713 = vsyncpa %s712, 1

</llo_original>
